<compile_context>
chip_gen: v7x
topology: tpu7x:2x2x1
jax: 0.10.0
libtpu: 0.0.40
codegen_flags: <defaults>
</compile_context>

<pallas_src>
import jax
import jax.numpy as jnp
from jax.experimental import pallas as pl
from jax.experimental.pallas import tpu as pltpu


def _round_up(x, m):
    return ((x + m - 1) // m) * m


# --------------------------------------------------------------------------
# Kernel: one fused matmul per batch block, bias folded into the accumulator.
#   y_block = b + x_block @ W_fused        (x zero-padded along K -> exact)
# --------------------------------------------------------------------------
def translator_kernel(x_ref, w_ref, b_ref, o_ref):
    o_ref[...] = (
        b_ref[...]
        + jnp.dot(x_ref[...], w_ref[...], preferred_element_type=jnp.float32)
    ).astype(o_ref.dtype)


# --------------------------------------------------------------------------
# One-time parameter preparation (hoisted out of the forward pass).
# --------------------------------------------------------------------------
def prepare_params(params):
    s_dim = params["pert_embed"].shape[1]
    c_dim = params["cell_embed"].shape[1]
    W = params["lin_w"]                      # [T, s + c + T]
    T = W.shape[0]
    K = W.shape[1]
    K_pad = _round_up(K, 128)                # 224 -> 256 (full MXU depth)

    # Fused, transposed, zero-padded weight: [K_pad, T].
    w_t = jnp.zeros((K_pad, T), W.dtype).at[:K, :].set(W.T)
    b = params["lin_b"].reshape(1, T)

    # (bf16 matmul inputs with f32 accumulation would roughly double MXU
    #  throughput on v6e/v7x; kept f32 here to match the reference tightly.)
    return {
        "pert_embed": params["pert_embed"],
        "cell_embed": params["cell_embed"],
        "w_t": w_t,
        "b": b,
        "s_dim": s_dim,
        "c_dim": c_dim,
        "k_dim": K,
        "k_pad": K_pad,
        "target_dim": T,
    }


# --------------------------------------------------------------------------
# Forward pass.
# --------------------------------------------------------------------------
def translator_forward(prep, inp, *, block_b=512, min_pallas_batch=0):
    """prep: output of prepare_params().  inp: dict with 'smiles', 'cell'
    (int32 index vectors) and 'pre_treatment' [B, target_dim].

    min_pallas_batch: below this batch size fall back to plain XLA (a single
    tiny matmul is launch-overhead bound in Pallas; ~256 is a sensible
    threshold in production).  Default 0 so the Pallas path is always taken.
    """
    pemb = jnp.take(prep["pert_embed"], inp["smiles"], axis=0)   # [B, 64]
    cemb = jnp.take(prep["cell_embed"], inp["cell"], axis=0)     # [B, 32]
    pre = inp["pre_treatment"]                                   # [B, T]

    B = pre.shape[0]
    K, K_pad, T = prep["k_dim"], prep["k_pad"], prep["target_dim"]

    if B < min_pallas_batch:
        # XLA path for tiny batches.
        x = jnp.concatenate([pemb, cemb, pre], axis=1)
        return x @ prep["w_t"][:K, :] + prep["b"]

    # Build the fused, K-padded operand in one concat (XLA fuses this with the
    # gathers into a single producer of the [B, K_pad] array).
    pieces = [pemb, cemb, pre]
    if K_pad > K:
        pieces.append(jnp.zeros((B, K_pad - K), pre.dtype))
    x = jnp.concatenate(pieces, axis=1)                          # [B, K_pad]

    # Batch tiling: block of up to `block_b` rows, multiple of 8 sublanes.
    tb = min(block_b, _round_up(B, 8))
    B_pad = _round_up(B, tb)
    if B_pad != B:
        x = jnp.pad(x, ((0, B_pad - B), (0, 0)))

    out = pl.pallas_call(
        translator_kernel,
        out_shape=jax.ShapeDtypeStruct((B_pad, T), jnp.float32),
        grid_spec=pltpu.PrefetchScalarGridSpec(
            num_scalar_prefetch=0,
            grid=(B_pad // tb,),
            in_specs=[
                # activations: tiled over batch
                pl.BlockSpec((tb, K_pad), lambda i: (i, 0)),
                # fused weight: VMEM-resident across all batch blocks
                pl.BlockSpec((K_pad, T), lambda i: (0, 0)),
                # bias: VMEM-resident
                pl.BlockSpec((1, T), lambda i: (0, 0)),
            ],
            out_specs=pl.BlockSpec((tb, T), lambda i: (i, 0)),
        ),
        compiler_params=pltpu.CompilerParams(
            dimension_semantics=("parallel",),
        ),
    )(x, prep["w_t"], prep["b"])

    return out[:B] if B_pad != B else out


# --------------------------------------------------------------------------
# Pure-JAX reference (matches the PyTorch module's forward).
# --------------------------------------------------------------------------
def translator_reference(params, inp):
    pemb = jnp.take(params["pert_embed"], inp["smiles"], axis=0)
    cemb = jnp.take(params["cell_embed"], inp["cell"], axis=0)
    x = jnp.concatenate([pemb, cemb, inp["pre_treatment"]], axis=1)
    return x @ params["lin_w"].T + params["lin_b"]


if __name__ == "__main__":
    # Synthetic config consistent with the module (no .pt files loaded).
    smiles_emb_size = 64
    cell_emb_size = 32
    target_dim = 128
    num_smiles = 16   # synthetic vocab size for smiles_types
    num_cells = 4     # synthetic vocab size for cell_types
    batch = 8

    key = jax.random.PRNGKey(0)
    k1, k2, k3, k4, k5, k6, k7 = jax.random.split(key, 7)

    input_dim = smiles_emb_size + cell_emb_size + target_dim
    params = {
        "pert_embed": jax.random.normal(k1, (num_smiles, smiles_emb_size), jnp.float32),
        "cell_embed": jax.random.normal(k2, (num_cells, cell_emb_size), jnp.float32),
        "lin_w": jax.random.uniform(k3, (target_dim, input_dim), jnp.float32,
                                    minval=-0.05, maxval=0.05),
        "lin_b": jax.random.uniform(k4, (target_dim,), jnp.float32,
                                    minval=-0.05, maxval=0.05),
    }

    inp = {
        "smiles": jax.random.randint(k5, (batch,), 0, num_smiles, jnp.int32),
        "cell": jax.random.randint(k6, (batch,), 0, num_cells, jnp.int32),
        "pre_treatment": jax.random.normal(k7, (batch, target_dim), jnp.float32),
    }

    prep = prepare_params(params)                       # one-time weight prep
    out = translator_forward(prep, inp)                 # Pallas path
    out = jax.block_until_ready(out)

    ref = translator_reference(params, inp)
    assert out.shape == (batch, target_dim)
    assert jnp.allclose(out, ref, atol=1e-4, rtol=1e-4), "mismatch vs reference"

    print("KERNEL_OK")
</pallas_src>

<mosaic_0001>
module attributes {stable_mosaic.version = 11 : i64} {
  func.func @translator_kernel(%arg0: i32, %arg1: memref<8x256xf32, #tpu.memory_space<vmem>>, %arg2: memref<256x128xf32, #tpu.memory_space<vmem>>, %arg3: memref<1x128xf32, #tpu.memory_space<vmem>>, %arg4: memref<8x128xf32, #tpu.memory_space<vmem>>) attributes {dimension_semantics = [#tpu.dimension_semantics<parallel>], iteration_bounds = array<i64: 1>, scalar_prefetch = 0 : i64, scratch_operands = 0 : i64, tpu.core_type = #tpu.core_type<tc>, window_params = [{transform_indices = @transform_0, window_bounds = array<i64: 8, 256>}, {pipeline_mode = #tpu.pipeline_mode<synchronous>, transform_indices = @transform_1, window_bounds = array<i64: 256, 128>}, {pipeline_mode = #tpu.pipeline_mode<synchronous>, transform_indices = @transform_2, window_bounds = array<i64: 1, 128>}, {transform_indices = @transform_3, window_bounds = array<i64: 8, 128>}]} {
    %c0 = arith.constant 0 : index
    %c0_0 = arith.constant 0 : index
    %0 = vector.load %arg3[%c0, %c0_0] : memref<1x128xf32, #tpu.memory_space<vmem>>, vector<1x128xf32>
    %c0_1 = arith.constant 0 : index
    %c0_2 = arith.constant 0 : index
    %1 = vector.load %arg1[%c0_1, %c0_2] : memref<8x256xf32, #tpu.memory_space<vmem>>, vector<8x256xf32>
    %c0_3 = arith.constant 0 : index
    %c0_4 = arith.constant 0 : index
    %2 = vector.load %arg2[%c0_3, %c0_4] : memref<256x128xf32, #tpu.memory_space<vmem>>, vector<256x128xf32>
    %cst = arith.constant dense<0.000000e+00> : vector<8x128xf32>
    %3 = tpu.matmul %1, %2, %cst {dimension_numbers = #tpu.dot_dimension_numbers<[1], [0], [0], [1], [0, 0, 1, 1], [], []>} : vector<8x256xf32>, vector<256x128xf32>, vector<8x128xf32> -> vector<8x128xf32>
    %4 = vector.broadcast %0 : vector<1x128xf32> to vector<8x128xf32>
    %5 = arith.addf %4, %3 : vector<8x128xf32>
    %c0_5 = arith.constant 0 : index
    %c0_6 = arith.constant 0 : index
    %6 = vector.load %arg4[%c0_5, %c0_6] : memref<8x128xf32, #tpu.memory_space<vmem>>, vector<8x128xf32>
    tpu.vector_store %arg4[%c0_5, %c0_6], %5 {strides = array<i32>} : memref<8x128xf32, #tpu.memory_space<vmem>>, vector<8x128xf32>,
    return
  }
  func.func @transform_0(%arg0: i32) -> (i32, i32) {
    %c0_i32 = arith.constant 0 : i32
    %c0_i32_0 = arith.constant 0 : i32
    return %arg0, %c0_i32 : i32, i32
  }
  func.func @transform_1(%arg0: i32) -> (i32, i32) {
    %c0_i32 = arith.constant 0 : i32
    %c0_i32_0 = arith.constant 0 : i32
    %c0_i32_1 = arith.constant 0 : i32
    return %c0_i32, %c0_i32_0 : i32, i32
  }
  func.func @transform_2(%arg0: i32) -> (i32, i32) {
    %c0_i32 = arith.constant 0 : i32
    %c0_i32_0 = arith.constant 0 : i32
    %c0_i32_1 = arith.constant 0 : i32
    return %c0_i32, %c0_i32_0 : i32, i32
  }
  func.func @transform_3(%arg0: i32) -> (i32, i32) {
    %c0_i32 = arith.constant 0 : i32
    %c0_i32_0 = arith.constant 0 : i32
    return %arg0, %c0_i32 : i32, i32
  }
}

</mosaic_0001>

<llo_original>
// kernel: tpu_custom_call.1
$region0: #{tpu_custom_call.1}
  #allocation0 [shape = 'u32[]', space=smem, size = 0x4, offset = 0x4, fixed_abs, tag = 'smem constant byte address 0x4 - core index']
  #allocation1 [shape = 'u32[144,128]{1,0:T(1,128)}', space=vmem, size = 0x12000, scoped, tag = 'internal scratch']
  %s0 = inlined_call_operand.hbm [shape: f32[8,256], index: 0, kind: input, shape index: {}]
  %s1 = inlined_call_operand.hbm [shape: f32[256,128], index: 1, kind: input, shape index: {}]
  %s2 = inlined_call_operand.vmem [shape: f32[1,128], index: 2, kind: input, shape index: {}]
  %s3 = inlined_call_operand.hbm [shape: f32[8,128], index: 3, kind: output, shape index: {}]
  %s4 = sld [smem:[#allocation0]]
  $region30: #{tpu_custom_call.1} parent=0
    _
  %s6 = ssub.s32 1, %s4
  %s7 = scalar_select 0, %s6, %s4
  $region1: #{tpu_custom_call.1} parent=0
    #allocation2 [shape = 'u8[8192]{0}', space=vmem, size = 0x2000, scoped, tag = 'input window, operand 0, single buffered']
    #allocation3 [shape = 's32[1]{0}', space=sflag, size = 0x4, scoped, tag = 'scoped memory for tpu_custom_call.1']
    #allocation4 [shape = 's32[1]{0}', space=sflag, size = 0x4, scoped, tag = 'scoped memory for tpu_custom_call.1']
    #allocation5 [shape = 'u8[131072]{0}', space=vmem, size = 0x20000, scoped, tag = 'input window, operand 1, single buffered']
    #allocation6 [shape = 's32[1]{0}', space=sflag, size = 0x4, scoped, tag = 'scoped memory for tpu_custom_call.1']
    #allocation7 [shape = 'u8[4096]{0}', space=vmem, size = 0x1000, scoped, tag = 'output window, operand 0, single buffered']
    %8 = vsyncpa [#allocation3], 0
    %9 = vsyncpa [#allocation6], 0
    %10 = vsyncpa [#allocation4], 0
    // Predicated region
    $region2: #{tpu_custom_call.1} parent=1 // pred_check
      _
    $region3: #{tpu_custom_call.1} parent=1 // pred_check_branch
      %12 = sbr.rel (0) target = $region5
    $region4: #{tpu_custom_call.1} parent=1 // pred_region
      %s14 = ssub.s32 256, 256
      %15 = vsyncadd [#allocation3], %s14
      %s17 = sshll.u32 [#allocation2], 4
      %s18 = int_to_ptr.vmem [resolvable:$true] %s17
      %20 = dma.hbm_to_vmem [thread:$0]  %s0, 256, %s18, [#allocation3]
    $region5: #{tpu_custom_call.1} parent=1 // pred_fallthru
      _
    // Predicated region
    $region6: #{tpu_custom_call.1} parent=1 // pred_check
      _
    $region7: #{tpu_custom_call.1} parent=1 // pred_check_branch
      %22 = sbr.rel (0) target = $region9
    $region8: #{tpu_custom_call.1} parent=1 // pred_region
      %s24 = ssub.s32 4096, 4096
      %25 = vsyncadd [#allocation6], %s24
      %s26 = sshll.u32 [#allocation5], 4
      %s27 = int_to_ptr.vmem [resolvable:$true] %s26
      %32 = dma.hbm_to_vmem [thread:$0]  %s1, 4096, %s27, [#allocation6], 128, 128, 8
    $region9: #{tpu_custom_call.1} parent=1 // pred_fallthru
      _
    // Predicated region
    $region10: #{tpu_custom_call.1} parent=1 // pred_check
      _
    $region11: #{tpu_custom_call.1} parent=1 // pred_check_branch
      %34 = sbr.rel (0) target = $region13
    $region12: #{tpu_custom_call.1} parent=1 // pred_region
      _
    $region13: #{tpu_custom_call.1} parent=1 // pred_fallthru
      _
    // Predicated region
    $region14: #{tpu_custom_call.1} parent=1 // pred_check
      _
    $region15: #{tpu_custom_call.1} parent=1 // pred_check_branch
      %36 = sbr.rel (0) target = $region17
    $region16: #{tpu_custom_call.1} parent=1 // pred_region
      %37 = dma.done [#allocation3], 256
    $region17: #{tpu_custom_call.1} parent=1 // pred_fallthru
      _
    // Predicated region
    $region18: #{tpu_custom_call.1} parent=1 // pred_check
      _
    $region19: #{tpu_custom_call.1} parent=1 // pred_check_branch
      %39 = sbr.rel (0) target = $region21
    $region20: #{tpu_custom_call.1} parent=1 // pred_region
      %40 = dma.done [#allocation6], 4096
    $region21: #{tpu_custom_call.1} parent=1 // pred_fallthru
      _
    %v41 = vld [vmem:[%s2] sm:$0x1]
    %v42 = vld [vmem:[#allocation2] sm:$0xff]
    %v43 = vld [vmem:[#allocation2 + $0x8] sm:$0xff]
    %v44 = vld [vmem:[#allocation5] sm:$0xff]
    %v45 = vld [vmem:[#allocation5 + $0x8] sm:$0xff]
    %v46 = vld [vmem:[#allocation5 + $0x10] sm:$0xff]
    %v47 = vld [vmem:[#allocation5 + $0x18] sm:$0xff]
    %v48 = vld [vmem:[#allocation5 + $0x20] sm:$0xff]
    %v49 = vld [vmem:[#allocation5 + $0x28] sm:$0xff]
    %v50 = vld [vmem:[#allocation5 + $0x30] sm:$0xff]
    %v51 = vld [vmem:[#allocation5 + $0x38] sm:$0xff]
    %v52 = vld [vmem:[#allocation5 + $0x40] sm:$0xff]
    %v53 = vld [vmem:[#allocation5 + $0x48] sm:$0xff]
    %v54 = vld [vmem:[#allocation5 + $0x50] sm:$0xff]
    %v55 = vld [vmem:[#allocation5 + $0x58] sm:$0xff]
    %v56 = vld [vmem:[#allocation5 + $0x60] sm:$0xff]
    %v57 = vld [vmem:[#allocation5 + $0x68] sm:$0xff]
    %v58 = vld [vmem:[#allocation5 + $0x70] sm:$0xff]
    %v59 = vld [vmem:[#allocation5 + $0x78] sm:$0xff]
    %v60 = vld [vmem:[#allocation5 + $0x80] sm:$0xff]
    %v61 = vld [vmem:[#allocation5 + $0x88] sm:$0xff]
    %v62 = vld [vmem:[#allocation5 + $0x90] sm:$0xff]
    %v63 = vld [vmem:[#allocation5 + $0x98] sm:$0xff]
    %v64 = vld [vmem:[#allocation5 + $0xa0] sm:$0xff]
    %v65 = vld [vmem:[#allocation5 + $0xa8] sm:$0xff]
    %v66 = vld [vmem:[#allocation5 + $0xb0] sm:$0xff]
    %v67 = vld [vmem:[#allocation5 + $0xb8] sm:$0xff]
    %v68 = vld [vmem:[#allocation5 + $0xc0] sm:$0xff]
    %v69 = vld [vmem:[#allocation5 + $0xc8] sm:$0xff]
    %v70 = vld [vmem:[#allocation5 + $0xd0] sm:$0xff]
    %v71 = vld [vmem:[#allocation5 + $0xd8] sm:$0xff]
    %v72 = vld [vmem:[#allocation5 + $0xe0] sm:$0xff]
    %v73 = vld [vmem:[#allocation5 + $0xe8] sm:$0xff]
    %v74 = vld [vmem:[#allocation5 + $0xf0] sm:$0xff]
    %v75 = vld [vmem:[#allocation5 + $0xf8] sm:$0xff]
    %76 = vmatprep.subr.mxu0 0.0
    %77 = vmatpush1.msra.mxu0 %v44
    %78 = vmatprep.subr.mxu0 0.0
    %79 = vmatpush1.msra.mxu0 %v45
    %80 = vmatprep.subr.mxu0 0.0
    %81 = vmatpush1.msra.mxu0 %v46
    %82 = vmatprep.subr.mxu0 0.0
    %83 = vmatpush1.msra.mxu0 %v47
    %84 = vmatprep.subr.mxu0 0.0
    %85 = vmatpush1.msra.mxu0 %v48
    %86 = vmatprep.subr.mxu0 0.0
    %87 = vmatpush1.msra.mxu0 %v49
    %88 = vmatprep.subr.mxu0 0.0
    %89 = vmatpush1.msra.mxu0 %v50
    %90 = vmatprep.subr.mxu0 0.0
    %91 = vmatpush1.msra.mxu0 %v51
    %92 = vmatprep.subr.mxu0 0.0
    %93 = vmatpush1.msra.mxu0 %v52
    %94 = vmatprep.subr.mxu0 0.0
    %95 = vmatpush1.msra.mxu0 %v53
    %96 = vmatprep.subr.mxu0 0.0
    %97 = vmatpush1.msra.mxu0 %v54
    %98 = vmatprep.subr.mxu0 0.0
    %99 = vmatpush1.msra.mxu0 %v55
    %100 = vmatprep.subr.mxu0 0.0
    %101 = vmatpush1.msra.mxu0 %v56
    %102 = vmatprep.subr.mxu0 0.0
    %103 = vmatpush1.msra.mxu0 %v57
    %104 = vmatprep.subr.mxu0 0.0
    %105 = vmatpush1.msra.mxu0 %v58
    %106 = vmatprep.subr.mxu0 0.0
    %107 = vmatpush1.msra.mxu0 %v59
    %108 = vmatprep.subr.mxu0 0.0
    %109 = vmatpush1.msra.mxu0 %v60
    %110 = vmatprep.subr.mxu0 0.0
    %111 = vmatpush1.msra.mxu0 %v61
    %112 = vmatprep.subr.mxu0 0.0
    %113 = vmatpush1.msra.mxu0 %v62
    %114 = vmatprep.subr.mxu0 0.0
    %115 = vmatpush1.msra.mxu0 %v63
    %116 = vmatprep.subr.mxu0 0.0
    %117 = vmatpush1.msra.mxu0 %v64
    %118 = vmatprep.subr.mxu0 0.0
    %119 = vmatpush1.msra.mxu0 %v65
    %120 = vmatprep.subr.mxu0 0.0
    %121 = vmatpush1.msra.mxu0 %v66
    %122 = vmatprep.subr.mxu0 0.0
    %123 = vmatpush1.msra.mxu0 %v67
    %124 = vmatprep.subr.mxu0 0.0
    %125 = vmatpush1.msra.mxu0 %v68
    %126 = vmatprep.subr.mxu0 0.0
    %127 = vmatpush1.msra.mxu0 %v69
    %128 = vmatprep.subr.mxu0 0.0
    %129 = vmatpush1.msra.mxu0 %v70
    %130 = vmatprep.subr.mxu0 0.0
    %131 = vmatpush1.msra.mxu0 %v71
    %132 = vmatprep.subr.mxu0 0.0
    %133 = vmatpush1.msra.mxu0 %v72
    %134 = vmatprep.subr.mxu0 0.0
    %135 = vmatpush1.msra.mxu0 %v73
    %136 = vmatprep.subr.mxu0 0.0
    %137 = vmatpush1.msra.mxu0 %v74
    %138 = vmatprep.subr.mxu0 0.0
    %139 = vmatpush1.msra.mxu0 %v75
    %140 = vmatprep.mubr.f32.mxu0 %v43
    %141 = vmatmul.mubr.f32.gmra.mrb[0].mxu0 %v42
    %v142 = vpop.f32.mrb[0].mxu0
    %v143 = vadd.f32 0.0, %v142
    %v144 = vpop.f32.mrb[0].mxu0
    %145 = vdwg.mxu0
    %v147 = vlaneseq
    %v148 = vshrl.u32 %v147, 7
    %v149 = vsub.s32 0, %v148
    %v150 = vrot.slane %v41, %v149
    %v152 = vadd.f32 %v150, %v143
    %153 = vst [vmem:[#allocation7] sm:$0xff] %v152
    // Predicated region
    $region22: #{tpu_custom_call.1} parent=1 // pred_check
      _
    $region23: #{tpu_custom_call.1} parent=1 // pred_check_branch
      %155 = sbr.rel (0) target = $region25
    $region24: #{tpu_custom_call.1} parent=1 // pred_region
      %s157 = ssub.s32 128, 128
      %158 = vsyncadd [#allocation4], %s157
      %s160 = sshll.u32 [#allocation7], 4
      %s161 = int_to_ptr.vmem [resolvable:$true] %s160
      %163 = dma.vmem_to_hbm [thread:$0]  %s161, 128, %s3, [#allocation4]
    $region25: #{tpu_custom_call.1} parent=1 // pred_fallthru
      _
    // Predicated region
    $region26: #{tpu_custom_call.1} parent=1 // pred_check
      _
    $region27: #{tpu_custom_call.1} parent=1 // pred_check_branch
      %165 = sbr.rel (0) target = $region29
    $region28: #{tpu_custom_call.1} parent=1 // pred_region
      %166 = dma.done [#allocation4], 128
    $region29: #{tpu_custom_call.1} parent=1 // pred_fallthru
      _
    %167 = vsyncpa [#allocation3], 1
    %168 = vsyncpa [#allocation6], 1
    %169 = vsyncpa [#allocation4], 1

</llo_original>
